<compile_context>
chip_gen: v7x
topology: tpu7x:2x2x1
jax: 0.10.0
libtpu: 0.0.40
codegen_flags: <defaults>
</compile_context>

<pallas_src>
import jax
import jax.numpy as jnp
from jax.experimental import pallas as pl
from jax.experimental.pallas import tpu as pltpu

LANE = 128        # vreg lane width (last-dim tiling unit)
_NEG = -1e30      # finite bias pad for dead logit columns -> exp() underflows to exactly 0


def _round_up(n, m):
    return (n + m - 1) // m * m


def _vmem_capacity_bytes():
    """Physical VMEM of the current TPU generation; conservative fallback if unknown."""
    try:
        cap = getattr(pltpu.get_tpu_info(), "vmem_capacity_bytes", None)
        if cap:
            return int(cap)
    except Exception:
        pass
    return 64 << 20   # assume the smallest (v7x-sized) VMEM when we cannot query


def _choose_tb(bp16, h1p, vmem_cap):
    """Threshold-based batch tile: large MXU-friendly tiles for large batches and >= 2
    grid steps whenever bp16 >= 128 (so both v7x TensorCores get work); otherwise one
    block (launch-overhead-bound regime)."""
    if bp16 >= 512:
        tb = 256
    elif bp16 >= 256:
        tb = 128
    elif bp16 >= 128:
        tb = 64
    else:
        return bp16
    # On small-VMEM parts (v7x: 64 MiB) large hidden dims make the f32 intermediates
    # (tb * (H1+H2+O) * 4) the dominant per-step footprint; cap the tile there.
    if tb > 128 and h1p >= 4096 and vmem_cap <= (96 << 20):
        tb = 128
    return tb


def _choose_dk(dp, h1p, vmem_cap):
    """Keep w1 whole when it comfortably fits VMEM; otherwise stream it along K using the
    largest lane-aligned block that divides Dp and whose double-buffered copy stays
    within ~1/4 of VMEM (<= 16 MiB)."""
    budget = min(16 << 20, max(vmem_cap // 4, 8 << 20))
    if dp * h1p * 2 <= budget:            # bf16 w1 fits -> single K block
        return dp
    dk_max = max(LANE, (budget // (4 * h1p)) // LANE * LANE)
    dk = LANE
    for cand in range(LANE, dp + 1, LANE):
        if dp % cand == 0 and cand <= dk_max:
            dk = cand
    return dk


def mlp_kernel(x_ref, w1_ref, b1_ref, w2_ref, b2_ref, w3_ref, b3_ref, o_ref, acc_ref):
    k = pl.program_id(1)

    @pl.when(k == 0)
    def _init():
        acc_ref[...] = jnp.zeros_like(acc_ref)

    # Layer-1 partial product for this K block (bf16 operands, f32 MXU accumulation).
    x = x_ref[...].astype(jnp.bfloat16)
    acc_ref[...] += jnp.dot(x, w1_ref[...], preferred_element_type=jnp.float32)

    @pl.when(k == pl.num_programs(1) - 1)
    def _finish():
        h1 = jnp.maximum(acc_ref[...] + b1_ref[...], 0.0).astype(jnp.bfloat16)
        h2 = jnp.dot(h1, w2_ref[...], preferred_element_type=jnp.float32) + b2_ref[...]
        h2 = jnp.maximum(h2, 0.0).astype(jnp.bfloat16)
        # Padded logit columns carry a finite -1e30 bias (no -inf/NaN in f32); after the
        # stable-softmax shift their exp underflows to exactly 0 -> zero probability.
        logits = jnp.dot(h2, w3_ref[...], preferred_element_type=jnp.float32) + b3_ref[...]
        m = jnp.max(logits, axis=-1, keepdims=True)
        e = jnp.exp(logits - m)
        denom = jnp.sum(e, axis=-1, keepdims=True)
        # Exact normalization: the approximate EUP reciprocal violated the rows-sum-to-1
        # check; the divide is epilogue-only and negligible.
        o_ref[...] = e / denom


def init_params(key, input_size, output_size):
    """Deterministic init matching torch.nn.Linear shapes (stored transposed as [in, out])."""
    h1 = input_size // 2
    h2 = input_size // 4
    k1, k2, k3, k4, k5, k6 = jax.random.split(key, 6)

    def lin(kw, kb, fan_in, fan_out):
        bound = 1.0 / (fan_in ** 0.5)
        w = jax.random.uniform(kw, (fan_in, fan_out), jnp.float32, -bound, bound)
        b = jax.random.uniform(kb, (1, fan_out), jnp.float32, -bound, bound)
        return w, b

    w1, b1 = lin(k1, k2, input_size, h1)
    w2, b2 = lin(k3, k4, h1, h2)
    w3, b3 = lin(k5, k6, h2, output_size)
    return {"w1": w1, "b1": b1, "w2": w2, "b2": b2, "w3": w3, "b3": b3}


def prepare_params(params):
    """Pad every feature dim to a 128-lane multiple and cast weights to bf16.

    Zero padding is inert through the matmuls/ReLU; the last layer's padded columns get a
    finite -1e30 bias so softmax assigns them exactly zero probability.  Biases stay f32
    (added to the f32 accumulator).
    """
    w1, b1 = params["w1"], params["b1"]
    w2, b2 = params["w2"], params["b2"]
    w3, b3 = params["w3"], params["b3"]

    D, H1 = w1.shape
    H2 = w2.shape[1]
    O = w3.shape[1]
    Dp, H1p, H2p, Op = (_round_up(n, LANE) for n in (D, H1, H2, O))
    # TODO(synk): on v6e/v7x (256x256 MXU) consider rounding K/N dims that land on odd
    # multiples of 128 up to 256; kept at 128 here to minimize padded memory.

    def pad_w(w, rp, cp):
        r, c = w.shape
        return jnp.pad(w, ((0, rp - r), (0, cp - c))).astype(jnp.bfloat16)

    def pad_b(b, cp, fill=0.0):
        b = jnp.asarray(b, jnp.float32).reshape(1, -1)
        return jnp.pad(b, ((0, 0), (0, cp - b.shape[1])), constant_values=fill)

    return {
        "w1": pad_w(w1, Dp, H1p), "b1": pad_b(b1, H1p),
        "w2": pad_w(w2, H1p, H2p), "b2": pad_b(b2, H2p),
        "w3": pad_w(w3, H2p, Op), "b3": pad_b(b3, Op, fill=_NEG),
        "in_features": D, "out_features": O,
    }


def mlp_forward(x, prepared, *, dk_override=None):
    """x: [B, input_size] float32.  Returns [B, output_size] float32 softmax probabilities."""
    w1, b1 = prepared["w1"], prepared["b1"]
    w2, b2 = prepared["w2"], prepared["b2"]
    w3, b3 = prepared["w3"], prepared["b3"]
    D, O = prepared["in_features"], prepared["out_features"]

    B = x.shape[0]
    Dp, H1p = w1.shape
    H2p = w2.shape[1]
    Op = w3.shape[1]

    vmem_cap = _vmem_capacity_bytes()

    # --- Batch tiling: threshold-based tile, THEN pad the batch up to the tile. ---
    Bp16 = _round_up(B, 16)                  # bf16 sublane-pack grain (16 rows / packed vreg)
    tb = _choose_tb(Bp16, H1p, vmem_cap)
    Bp = _round_up(Bp16, tb)
    nb = Bp // tb

    # --- K tiling for layer 1 (stream w1 when it would not fit VMEM). ---
    dk = dk_override if dk_override is not None else _choose_dk(Dp, H1p, vmem_cap)
    assert Dp % dk == 0 and dk % LANE == 0
    nk = Dp // dk

    # --- Input staging: skip the wrapper-side pad/cast HBM pass when already aligned. ---
    aligned = (D == Dp) and (B == Bp)
    if aligned:
        xp = x                               # f32; cast to bf16 inside the kernel
    else:
        xp = jnp.zeros((Bp, Dp), jnp.bfloat16).at[:B, :D].set(x.astype(jnp.bfloat16))
    x_bytes = xp.dtype.itemsize

    # --- Pipelining hints. ---
    single = pl.Buffered(1)                  # grid-invariant operands: no double-buffer
    x_mode = pl.Buffered(3) if (nk == 1 and nb >= 4) else None   # hide x DMA when mem-bound
    w1_mode = single if nk == 1 else None    # double-buffer w1 only when it streams over K

    # --- Advisory cost estimate for the XLA scheduler. ---
    flops = 2 * Bp * (Dp * H1p + H1p * H2p + H2p * Op)
    bytes_accessed = (xp.size * x_bytes
                      + (w1.size + w2.size + w3.size) * 2
                      + (b1.size + b2.size + b3.size) * 4
                      + Bp * Op * 4)
    cost = pl.CostEstimate(flops=flops, transcendentals=Bp * Op,
                           bytes_accessed=bytes_accessed)

    # --- Generation-aware VMEM budget (single-buffered weights counted once). ---
    x_bufs = 3 if x_mode is not None else 2
    per_call = (x_bufs * tb * dk * x_bytes
                + 2 * tb * Op * 4                            # double-buffered output tiles
                + (2 if nk > 1 else 1) * dk * H1p * 2        # w1 block(s)
                + (H1p * H2p + H2p * Op) * 2                 # w2, w3 (single-buffered)
                + (H1p + H2p + Op) * 4                       # biases
                + tb * H1p * 4                               # f32 accumulator scratch
                + tb * (H1p + H2p + 2 * Op) * 4)             # live intermediates (generous)
    ceiling = max(32 << 20, int(vmem_cap * 0.85))            # ~54 MiB on v7x, ~108 MiB on v5e/v6e
    vmem_limit = int(min(max(per_call + (8 << 20), 32 << 20), ceiling))

    grid = (nb, nk)
    out_shape = jax.ShapeDtypeStruct((Bp, Op), jnp.float32)
    # TODO(synk): for O << 128 with huge batches, store bf16 output (or return the padded
    # slab for the consumer to slice/fuse) to cut output writeback bandwidth.

    def run(use_hints):
        def hint(m):
            return m if use_hints else None
        in_specs = [
            pl.BlockSpec((tb, dk), lambda i, k: (i, k), pipeline_mode=hint(x_mode)),
            pl.BlockSpec((dk, H1p), lambda i, k: (k, 0), pipeline_mode=hint(w1_mode)),
            pl.BlockSpec((1, H1p), lambda i, k: (0, 0), pipeline_mode=hint(single)),
            pl.BlockSpec((H1p, H2p), lambda i, k: (0, 0), pipeline_mode=hint(single)),
            pl.BlockSpec((1, H2p), lambda i, k: (0, 0), pipeline_mode=hint(single)),
            pl.BlockSpec((H2p, Op), lambda i, k: (0, 0), pipeline_mode=hint(single)),
            pl.BlockSpec((1, Op), lambda i, k: (0, 0), pipeline_mode=hint(single)),
        ]
        out = pl.pallas_call(
            mlp_kernel,
            out_shape=out_shape,
            grid=grid,
            in_specs=in_specs,
            out_specs=pl.BlockSpec((tb, Op), lambda i, k: (i, 0)),
            scratch_shapes=[pltpu.VMEM((tb, H1p), jnp.float32)],
            compiler_params=pltpu.CompilerParams(
                dimension_semantics=("parallel", "arbitrary"),
                vmem_limit_bytes=vmem_limit),
            cost_estimate=cost,
        )(xp, w1, b1, w2, b2, w3, b3)
        return jax.block_until_ready(out)

    try:
        out = run(use_hints=True)
    except Exception:
        # Buffer-count hints are advisory; fall back to default pipelining if this
        # jax/Mosaic build rejects pipeline_mode.
        out = run(use_hints=False)

    # Lane-dense padded slab is stored by the kernel; slice real rows/columns here.
    return out[:B, :O]


def mlp_reference(x, p):
    """Pure-JAX reference with the same bf16-operand / f32-accumulate arithmetic."""
    xb = x.astype(jnp.bfloat16)
    h1 = jnp.dot(xb, p["w1"].astype(jnp.bfloat16),
                 preferred_element_type=jnp.float32) + p["b1"]
    h1 = jnp.maximum(h1, 0.0).astype(jnp.bfloat16)
    h2 = jnp.dot(h1, p["w2"].astype(jnp.bfloat16),
                 preferred_element_type=jnp.float32) + p["b2"]
    h2 = jnp.maximum(h2, 0.0).astype(jnp.bfloat16)
    logits = jnp.dot(h2, p["w3"].astype(jnp.bfloat16),
                     preferred_element_type=jnp.float32) + p["b3"]
    return jax.nn.softmax(logits, axis=-1)


if __name__ == "__main__":
    key = jax.random.PRNGKey(0)

    def check(batch, input_size, output_size, subkey, dk_override=None):
        kx, kp = jax.random.split(subkey)
        x = jax.random.normal(kx, (batch, input_size), jnp.float32)
        params = init_params(kp, input_size, output_size)
        prepared = prepare_params(params)
        out = jax.block_until_ready(mlp_forward(x, prepared, dk_override=dk_override))
        ref = mlp_reference(x, params)
        assert out.shape == (batch, output_size)
        assert jnp.allclose(out, ref, atol=2e-3, rtol=2e-3), "mismatch vs pure-JAX reference"
        assert jnp.allclose(jnp.sum(out, axis=-1), 1.0, atol=1e-3), "softmax rows must sum to 1"

    k1, k2, k3 = jax.random.split(key, 3)
    # Small shape matching the original module scale (padded path, single K block).
    check(16, 64, 16, k1)
    # K-tiled (streamed w1) + multi-batch-tile path with padded batch rows.
    check(160, 512, 16, k2, dk_override=128)
    # Aligned fast path (no wrapper-side pad; f32 x cast to bf16 in-kernel), 2 batch steps.
    check(128, 128, 16, k3)

    print("KERNEL_OK")
</pallas_src>

<mosaic_0001>
module attributes {stable_mosaic.version = 11 : i64} {
  func.func @mlp_kernel(%arg0: i32, %arg1: i32, %arg2: memref<16x128xbf16, #tpu.memory_space<vmem>>, %arg3: memref<128x128xbf16, #tpu.memory_space<vmem>>, %arg4: memref<1x128xf32, #tpu.memory_space<vmem>>, %arg5: memref<128x128xbf16, #tpu.memory_space<vmem>>, %arg6: memref<1x128xf32, #tpu.memory_space<vmem>>, %arg7: memref<128x128xbf16, #tpu.memory_space<vmem>>, %arg8: memref<1x128xf32, #tpu.memory_space<vmem>>, %arg9: memref<16x128xf32, #tpu.memory_space<vmem>>, %arg10: memref<16x128xf32, #tpu.memory_space<vmem>>) attributes {dimension_semantics = [#tpu.dimension_semantics<parallel>, #tpu.dimension_semantics<arbitrary>], iteration_bounds = array<i64: 1, 1>, scalar_prefetch = 0 : i64, scratch_operands = 1 : i64, tpu.core_type = #tpu.core_type<tc>, window_params = [{transform_indices = @transform_0, window_bounds = array<i64: 16, 128>}, {pipeline_mode = #tpu.pipeline_mode<synchronous>, transform_indices = @transform_1, window_bounds = array<i64: 128, 128>}, {pipeline_mode = #tpu.pipeline_mode<synchronous>, transform_indices = @transform_2, window_bounds = array<i64: 1, 128>}, {pipeline_mode = #tpu.pipeline_mode<synchronous>, transform_indices = @transform_3, window_bounds = array<i64: 128, 128>}, {pipeline_mode = #tpu.pipeline_mode<synchronous>, transform_indices = @transform_4, window_bounds = array<i64: 1, 128>}, {pipeline_mode = #tpu.pipeline_mode<synchronous>, transform_indices = @transform_5, window_bounds = array<i64: 128, 128>}, {pipeline_mode = #tpu.pipeline_mode<synchronous>, transform_indices = @transform_6, window_bounds = array<i64: 1, 128>}, {transform_indices = @transform_7, window_bounds = array<i64: 16, 128>}]} {
    %c0_i32 = arith.constant 0 : i32
    %0 = arith.cmpi eq, %arg1, %c0_i32 : i32
    %1 = arith.extui %0 : i1 to i32
    %c0_i32_0 = arith.constant 0 : i32
    %2 = arith.cmpi ne, %1, %c0_i32_0 : i32
    scf.if %2 {
      %cst_10 = arith.constant 0.000000e+00 : f32
      %12 = vector.broadcast %cst_10 : f32 to vector<16x128xf32>
      %c0_11 = arith.constant 0 : index
      %c0_12 = arith.constant 0 : index
      %13 = vector.load %arg10[%c0_11, %c0_12] : memref<16x128xf32, #tpu.memory_space<vmem>>, vector<16x128xf32>
      tpu.vector_store %arg10[%c0_11, %c0_12], %12 {strides = array<i32>} : memref<16x128xf32, #tpu.memory_space<vmem>>, vector<16x128xf32>,
    } else {
    }
    %c0 = arith.constant 0 : index
    %c0_1 = arith.constant 0 : index
    %3 = vector.load %arg2[%c0, %c0_1] : memref<16x128xbf16, #tpu.memory_space<vmem>>, vector<16x128xbf16>
    %c0_2 = arith.constant 0 : index
    %c0_3 = arith.constant 0 : index
    %4 = vector.load %arg10[%c0_2, %c0_3] : memref<16x128xf32, #tpu.memory_space<vmem>>, vector<16x128xf32>
    %c0_4 = arith.constant 0 : index
    %c0_5 = arith.constant 0 : index
    %5 = vector.load %arg3[%c0_4, %c0_5] : memref<128x128xbf16, #tpu.memory_space<vmem>>, vector<128x128xbf16>
    %cst = arith.constant dense<0.000000e+00> : vector<16x128xf32>
    %6 = tpu.matmul %3, %5, %cst {dimension_numbers = #tpu.dot_dimension_numbers<[1], [0], [0], [1], [0, 0, 1, 1], [], []>} : vector<16x128xbf16>, vector<128x128xbf16>, vector<16x128xf32> -> vector<16x128xf32>
    %7 = arith.addf %4, %6 : vector<16x128xf32>
    %c0_6 = arith.constant 0 : index
    %c0_7 = arith.constant 0 : index
    %8 = vector.load %arg10[%c0_6, %c0_7] : memref<16x128xf32, #tpu.memory_space<vmem>>, vector<16x128xf32>
    tpu.vector_store %arg10[%c0_6, %c0_7], %7 {strides = array<i32>} : memref<16x128xf32, #tpu.memory_space<vmem>>, vector<16x128xf32>,
    %c0_i32_8 = arith.constant 0 : i32
    %9 = arith.cmpi eq, %arg1, %c0_i32_8 : i32
    %10 = arith.extui %9 : i1 to i32
    %c0_i32_9 = arith.constant 0 : i32
    %11 = arith.cmpi ne, %10, %c0_i32_9 : i32
    scf.if %11 {
      %c0_10 = arith.constant 0 : index
      %c0_11 = arith.constant 0 : index
      %12 = vector.load %arg10[%c0_10, %c0_11] : memref<16x128xf32, #tpu.memory_space<vmem>>, vector<16x128xf32>
      %c0_12 = arith.constant 0 : index
      %c0_13 = arith.constant 0 : index
      %13 = vector.load %arg4[%c0_12, %c0_13] : memref<1x128xf32, #tpu.memory_space<vmem>>, vector<1x128xf32>
      %14 = vector.broadcast %13 : vector<1x128xf32> to vector<16x128xf32>
      %15 = arith.addf %12, %14 : vector<16x128xf32>
      %cst_14 = arith.constant 0.000000e+00 : f32
      %16 = vector.broadcast %cst_14 : f32 to vector<16x128xf32>
      %17 = arith.maximumf %15, %16 : vector<16x128xf32>
      %18 = arith.truncf %17 : vector<16x128xf32> to vector<16x128xbf16>
      %c0_15 = arith.constant 0 : index
      %c0_16 = arith.constant 0 : index
      %19 = vector.load %arg5[%c0_15, %c0_16] : memref<128x128xbf16, #tpu.memory_space<vmem>>, vector<128x128xbf16>
      %cst_17 = arith.constant dense<0.000000e+00> : vector<16x128xf32>
      %20 = tpu.matmul %18, %19, %cst_17 {dimension_numbers = #tpu.dot_dimension_numbers<[1], [0], [0], [1], [0, 0, 1, 1], [], []>} : vector<16x128xbf16>, vector<128x128xbf16>, vector<16x128xf32> -> vector<16x128xf32>
      %c0_18 = arith.constant 0 : index
      %c0_19 = arith.constant 0 : index
      %21 = vector.load %arg6[%c0_18, %c0_19] : memref<1x128xf32, #tpu.memory_space<vmem>>, vector<1x128xf32>
      %22 = vector.broadcast %21 : vector<1x128xf32> to vector<16x128xf32>
      %23 = arith.addf %20, %22 : vector<16x128xf32>
      %cst_20 = arith.constant 0.000000e+00 : f32
      %24 = vector.broadcast %cst_20 : f32 to vector<16x128xf32>
      %25 = arith.maximumf %23, %24 : vector<16x128xf32>
      %26 = arith.truncf %25 : vector<16x128xf32> to vector<16x128xbf16>
      %c0_21 = arith.constant 0 : index
      %c0_22 = arith.constant 0 : index
      %27 = vector.load %arg7[%c0_21, %c0_22] : memref<128x128xbf16, #tpu.memory_space<vmem>>, vector<128x128xbf16>
      %cst_23 = arith.constant dense<0.000000e+00> : vector<16x128xf32>
      %28 = tpu.matmul %26, %27, %cst_23 {dimension_numbers = #tpu.dot_dimension_numbers<[1], [0], [0], [1], [0, 0, 1, 1], [], []>} : vector<16x128xbf16>, vector<128x128xbf16>, vector<16x128xf32> -> vector<16x128xf32>
      %c0_24 = arith.constant 0 : index
      %c0_25 = arith.constant 0 : index
      %29 = vector.load %arg8[%c0_24, %c0_25] : memref<1x128xf32, #tpu.memory_space<vmem>>, vector<1x128xf32>
      %30 = vector.broadcast %29 : vector<1x128xf32> to vector<16x128xf32>
      %31 = arith.addf %28, %30 : vector<16x128xf32>
      %cst_26 = arith.constant dense<0xFF800000> : vector<16xf32>
      %32 = vector.multi_reduction <maximumf>, %31, %cst_26 [1] : vector<16x128xf32> to vector<16xf32>
      %33 = vector.shape_cast %32 : vector<16xf32> to vector<16x1xf32>
      %34 = vector.broadcast %33 : vector<16x1xf32> to vector<16x128xf32>
      %35 = arith.subf %31, %34 : vector<16x128xf32>
      %36 = math.exp %35 : vector<16x128xf32>
      %cst_27 = arith.constant dense<0.000000e+00> : vector<16xf32>
      %37 = vector.multi_reduction <add>, %36, %cst_27 [1] : vector<16x128xf32> to vector<16xf32>
      %38 = vector.shape_cast %37 : vector<16xf32> to vector<16x1xf32>
      %39 = vector.broadcast %38 : vector<16x1xf32> to vector<16x128xf32>
      %40 = arith.divf %36, %39 : vector<16x128xf32>
      %c0_28 = arith.constant 0 : index
      %c0_29 = arith.constant 0 : index
      %41 = vector.load %arg9[%c0_28, %c0_29] : memref<16x128xf32, #tpu.memory_space<vmem>>, vector<16x128xf32>
      tpu.vector_store %arg9[%c0_28, %c0_29], %40 {strides = array<i32>} : memref<16x128xf32, #tpu.memory_space<vmem>>, vector<16x128xf32>,
    } else {
    }
    return
  }
  func.func @transform_0(%arg0: i32, %arg1: i32) -> (i32, i32) {
    %c0_i32 = arith.constant 0 : i32
    return %arg0, %arg1 : i32, i32
  }
  func.func @transform_1(%arg0: i32, %arg1: i32) -> (i32, i32) {
    %c0_i32 = arith.constant 0 : i32
    %c0_i32_0 = arith.constant 0 : i32
    return %arg1, %c0_i32 : i32, i32
  }
  func.func @transform_2(%arg0: i32, %arg1: i32) -> (i32, i32) {
    %c0_i32 = arith.constant 0 : i32
    %c0_i32_0 = arith.constant 0 : i32
    %c0_i32_1 = arith.constant 0 : i32
    return %c0_i32, %c0_i32_0 : i32, i32
  }
  func.func @transform_3(%arg0: i32, %arg1: i32) -> (i32, i32) {
    %c0_i32 = arith.constant 0 : i32
    %c0_i32_0 = arith.constant 0 : i32
    %c0_i32_1 = arith.constant 0 : i32
    return %c0_i32, %c0_i32_0 : i32, i32
  }
  func.func @transform_4(%arg0: i32, %arg1: i32) -> (i32, i32) {
    %c0_i32 = arith.constant 0 : i32
    %c0_i32_0 = arith.constant 0 : i32
    %c0_i32_1 = arith.constant 0 : i32
    return %c0_i32, %c0_i32_0 : i32, i32
  }
  func.func @transform_5(%arg0: i32, %arg1: i32) -> (i32, i32) {
    %c0_i32 = arith.constant 0 : i32
    %c0_i32_0 = arith.constant 0 : i32
    %c0_i32_1 = arith.constant 0 : i32
    return %c0_i32, %c0_i32_0 : i32, i32
  }
  func.func @transform_6(%arg0: i32, %arg1: i32) -> (i32, i32) {
    %c0_i32 = arith.constant 0 : i32
    %c0_i32_0 = arith.constant 0 : i32
    %c0_i32_1 = arith.constant 0 : i32
    return %c0_i32, %c0_i32_0 : i32, i32
  }
  func.func @transform_7(%arg0: i32, %arg1: i32) -> (i32, i32) {
    %c0_i32 = arith.constant 0 : i32
    %c0_i32_0 = arith.constant 0 : i32
    return %arg0, %c0_i32 : i32, i32
  }
}

module attributes {stable_mosaic.version = 11 : i64} {
  func.func @mlp_kernel(%arg0: i32, %arg1: i32, %arg2: memref<16x128xbf16, #tpu.memory_space<vmem>>, %arg3: memref<128x128xbf16, #tpu.memory_space<vmem>>, %arg4: memref<1x128xf32, #tpu.memory_space<vmem>>, %arg5: memref<128x128xbf16, #tpu.memory_space<vmem>>, %arg6: memref<1x128xf32, #tpu.memory_space<vmem>>, %arg7: memref<128x128xbf16, #tpu.memory_space<vmem>>, %arg8: memref<1x128xf32, #tpu.memory_space<vmem>>, %arg9: memref<16x128xf32, #tpu.memory_space<vmem>>, %arg10: memref<16x128xf32, #tpu.memory_space<vmem>>) attributes {dimension_semantics = [#tpu.dimension_semantics<parallel>, #tpu.dimension_semantics<arbitrary>], iteration_bounds = array<i64: 1, 1>, scalar_prefetch = 0 : i64, scratch_operands = 1 : i64, tpu.core_type = #tpu.core_type<tc>, window_params = [{transform_indices = @transform_0, window_bounds = array<i64: 16, 128>}, {transform_indices = @transform_1, window_bounds = array<i64: 128, 128>}, {pipeline_mode = #tpu.pipeline_mode<synchronous>, transform_indices = @transform_2, window_bounds = array<i64: 1, 128>}, {pipeline_mode = #tpu.pipeline_mode<synchronous>, transform_indices = @transform_3, window_bounds = array<i64: 128, 128>}, {pipeline_mode = #tpu.pipeline_mode<synchronous>, transform_indices = @transform_4, window_bounds = array<i64: 1, 128>}, {pipeline_mode = #tpu.pipeline_mode<synchronous>, transform_indices = @transform_5, window_bounds = array<i64: 128, 128>}, {pipeline_mode = #tpu.pipeline_mode<synchronous>, transform_indices = @transform_6, window_bounds = array<i64: 1, 128>}, {transform_indices = @transform_7, window_bounds = array<i64: 16, 128>}]} {
    %c0_i32 = arith.constant 0 : i32
    %0 = arith.cmpi eq, %arg1, %c0_i32 : i32
    %1 = arith.extui %0 : i1 to i32
    %c0_i32_0 = arith.constant 0 : i32
    %2 = arith.cmpi ne, %1, %c0_i32_0 : i32
    scf.if %2 {
      %cst_10 = arith.constant 0.000000e+00 : f32
      %12 = vector.broadcast %cst_10 : f32 to vector<16x128xf32>
      %c0_11 = arith.constant 0 : index
      %c0_12 = arith.constant 0 : index
      %13 = vector.load %arg10[%c0_11, %c0_12] : memref<16x128xf32, #tpu.memory_space<vmem>>, vector<16x128xf32>
      tpu.vector_store %arg10[%c0_11, %c0_12], %12 {strides = array<i32>} : memref<16x128xf32, #tpu.memory_space<vmem>>, vector<16x128xf32>,
    } else {
    }
    %c0 = arith.constant 0 : index
    %c0_1 = arith.constant 0 : index
    %3 = vector.load %arg2[%c0, %c0_1] : memref<16x128xbf16, #tpu.memory_space<vmem>>, vector<16x128xbf16>
    %c0_2 = arith.constant 0 : index
    %c0_3 = arith.constant 0 : index
    %4 = vector.load %arg10[%c0_2, %c0_3] : memref<16x128xf32, #tpu.memory_space<vmem>>, vector<16x128xf32>
    %c0_4 = arith.constant 0 : index
    %c0_5 = arith.constant 0 : index
    %5 = vector.load %arg3[%c0_4, %c0_5] : memref<128x128xbf16, #tpu.memory_space<vmem>>, vector<128x128xbf16>
    %cst = arith.constant dense<0.000000e+00> : vector<16x128xf32>
    %6 = tpu.matmul %3, %5, %cst {dimension_numbers = #tpu.dot_dimension_numbers<[1], [0], [0], [1], [0, 0, 1, 1], [], []>} : vector<16x128xbf16>, vector<128x128xbf16>, vector<16x128xf32> -> vector<16x128xf32>
    %7 = arith.addf %4, %6 : vector<16x128xf32>
    %c0_6 = arith.constant 0 : index
    %c0_7 = arith.constant 0 : index
    %8 = vector.load %arg10[%c0_6, %c0_7] : memref<16x128xf32, #tpu.memory_space<vmem>>, vector<16x128xf32>
    tpu.vector_store %arg10[%c0_6, %c0_7], %7 {strides = array<i32>} : memref<16x128xf32, #tpu.memory_space<vmem>>, vector<16x128xf32>,
    %c0_i32_8 = arith.constant 0 : i32
    %9 = arith.cmpi eq, %arg1, %c0_i32_8 : i32
    %10 = arith.extui %9 : i1 to i32
    %c0_i32_9 = arith.constant 0 : i32
    %11 = arith.cmpi ne, %10, %c0_i32_9 : i32
    scf.if %11 {
      %c0_10 = arith.constant 0 : index
      %c0_11 = arith.constant 0 : index
      %12 = vector.load %arg10[%c0_10, %c0_11] : memref<16x128xf32, #tpu.memory_space<vmem>>, vector<16x128xf32>
      %c0_12 = arith.constant 0 : index
      %c0_13 = arith.constant 0 : index
      %13 = vector.load %arg4[%c0_12, %c0_13] : memref<1x128xf32, #tpu.memory_space<vmem>>, vector<1x128xf32>
      %14 = vector.broadcast %13 : vector<1x128xf32> to vector<16x128xf32>
      %15 = arith.addf %12, %14 : vector<16x128xf32>
      %cst_14 = arith.constant 0.000000e+00 : f32
      %16 = vector.broadcast %cst_14 : f32 to vector<16x128xf32>
      %17 = arith.maximumf %15, %16 : vector<16x128xf32>
      %18 = arith.truncf %17 : vector<16x128xf32> to vector<16x128xbf16>
      %c0_15 = arith.constant 0 : index
      %c0_16 = arith.constant 0 : index
      %19 = vector.load %arg5[%c0_15, %c0_16] : memref<128x128xbf16, #tpu.memory_space<vmem>>, vector<128x128xbf16>
      %cst_17 = arith.constant dense<0.000000e+00> : vector<16x128xf32>
      %20 = tpu.matmul %18, %19, %cst_17 {dimension_numbers = #tpu.dot_dimension_numbers<[1], [0], [0], [1], [0, 0, 1, 1], [], []>} : vector<16x128xbf16>, vector<128x128xbf16>, vector<16x128xf32> -> vector<16x128xf32>
      %c0_18 = arith.constant 0 : index
      %c0_19 = arith.constant 0 : index
      %21 = vector.load %arg6[%c0_18, %c0_19] : memref<1x128xf32, #tpu.memory_space<vmem>>, vector<1x128xf32>
      %22 = vector.broadcast %21 : vector<1x128xf32> to vector<16x128xf32>
      %23 = arith.addf %20, %22 : vector<16x128xf32>
      %cst_20 = arith.constant 0.000000e+00 : f32
      %24 = vector.broadcast %cst_20 : f32 to vector<16x128xf32>
      %25 = arith.maximumf %23, %24 : vector<16x128xf32>
      %26 = arith.truncf %25 : vector<16x128xf32> to vector<16x128xbf16>
      %c0_21 = arith.constant 0 : index
      %c0_22 = arith.constant 0 : index
      %27 = vector.load %arg7[%c0_21, %c0_22] : memref<128x128xbf16, #tpu.memory_space<vmem>>, vector<128x128xbf16>
      %cst_23 = arith.constant dense<0.000000e+00> : vector<16x128xf32>
      %28 = tpu.matmul %26, %27, %cst_23 {dimension_numbers = #tpu.dot_dimension_numbers<[1], [0], [0], [1], [0, 0, 1, 1], [], []>} : vector<16x128xbf16>, vector<128x128xbf16>, vector<16x128xf32> -> vector<16x128xf32>
      %c0_24 = arith.constant 0 : index
      %c0_25 = arith.constant 0 : index
      %29 = vector.load %arg8[%c0_24, %c0_25] : memref<1x128xf32, #tpu.memory_space<vmem>>, vector<1x128xf32>
      %30 = vector.broadcast %29 : vector<1x128xf32> to vector<16x128xf32>
      %31 = arith.addf %28, %30 : vector<16x128xf32>
      %cst_26 = arith.constant dense<0xFF800000> : vector<16xf32>
      %32 = vector.multi_reduction <maximumf>, %31, %cst_26 [1] : vector<16x128xf32> to vector<16xf32>
      %33 = vector.shape_cast %32 : vector<16xf32> to vector<16x1xf32>
      %34 = vector.broadcast %33 : vector<16x1xf32> to vector<16x128xf32>
      %35 = arith.subf %31, %34 : vector<16x128xf32>
      %36 = math.exp %35 : vector<16x128xf32>
      %cst_27 = arith.constant dense<0.000000e+00> : vector<16xf32>
      %37 = vector.multi_reduction <add>, %36, %cst_27 [1] : vector<16x128xf32> to vector<16xf32>
      %38 = vector.shape_cast %37 : vector<16xf32> to vector<16x1xf32>
      %39 = vector.broadcast %38 : vector<16x1xf32> to vector<16x128xf32>
      %40 = arith.divf %36, %39 : vector<16x128xf32>
      %c0_28 = arith.constant 0 : index
      %c0_29 = arith.constant 0 : index
      %41 = vector.load %arg9[%c0_28, %c0_29] : memref<16x128xf32, #tpu.memory_space<vmem>>, vector<16x128xf32>
      tpu.vector_store %arg9[%c0_28, %c0_29], %40 {strides = array<i32>} : memref<16x128xf32, #tpu.memory_space<vmem>>, vector<16x128xf32>,
    } else {
    }
    return
  }
  func.func @transform_0(%arg0: i32, %arg1: i32) -> (i32, i32) {
    %c0_i32 = arith.constant 0 : i32
    return %arg0, %arg1 : i32, i32
  }
  func.func @transform_1(%arg0: i32, %arg1: i32) -> (i32, i32) {
    %c0_i32 = arith.constant 0 : i32
    %c0_i32_0 = arith.constant 0 : i32
    return %arg1, %c0_i32 : i32, i32
  }
  func.func @transform_2(%arg0: i32, %arg1: i32) -> (i32, i32) {
    %c0_i32 = arith.constant 0 : i32
    %c0_i32_0 = arith.constant 0 : i32
    %c0_i32_1 = arith.constant 0 : i32
    return %c0_i32, %c0_i32_0 : i32, i32
  }
  func.func @transform_3(%arg0: i32, %arg1: i32) -> (i32, i32) {
    %c0_i32 = arith.constant 0 : i32
    %c0_i32_0 = arith.constant 0 : i32
    %c0_i32_1 = arith.constant 0 : i32
    return %c0_i32, %c0_i32_0 : i32, i32
  }
  func.func @transform_4(%arg0: i32, %arg1: i32) -> (i32, i32) {
    %c0_i32 = arith.constant 0 : i32
    %c0_i32_0 = arith.constant 0 : i32
    %c0_i32_1 = arith.constant 0 : i32
    return %c0_i32, %c0_i32_0 : i32, i32
  }
  func.func @transform_5(%arg0: i32, %arg1: i32) -> (i32, i32) {
    %c0_i32 = arith.constant 0 : i32
    %c0_i32_0 = arith.constant 0 : i32
    %c0_i32_1 = arith.constant 0 : i32
    return %c0_i32, %c0_i32_0 : i32, i32
  }
  func.func @transform_6(%arg0: i32, %arg1: i32) -> (i32, i32) {
    %c0_i32 = arith.constant 0 : i32
    %c0_i32_0 = arith.constant 0 : i32
    %c0_i32_1 = arith.constant 0 : i32
    return %c0_i32, %c0_i32_0 : i32, i32
  }
  func.func @transform_7(%arg0: i32, %arg1: i32) -> (i32, i32) {
    %c0_i32 = arith.constant 0 : i32
    %c0_i32_0 = arith.constant 0 : i32
    return %arg0, %c0_i32 : i32, i32
  }
}

</mosaic_0001>

<llo_original>
// kernel: tpu_custom_call.1
$region0: #{tpu_custom_call.1}
  #allocation0 [shape = 'u32[]', space=smem, size = 0x4, offset = 0x4, fixed_abs, tag = 'smem constant byte address 0x4 - core index']
  #allocation1 [shape = 'u32[144,128]{1,0:T(1,128)}', space=vmem, size = 0x12000, scoped, tag = 'internal scratch']
  #allocation2 [shape = 'f32[16,128]{1,0:T(8,128)}', space=vmem, size = 0x2000, scoped, tag = 'scratch operand']
  %s0 = inlined_call_operand.hbm [shape: bf16[16,128], index: 0, kind: input, shape index: {}]
  %s1 = inlined_call_operand.hbm [shape: bf16[128,128], index: 1, kind: input, shape index: {}]
  %s2 = inlined_call_operand.vmem [shape: f32[1,128], index: 2, kind: input, shape index: {}]
  %s3 = inlined_call_operand.hbm [shape: bf16[128,128], index: 3, kind: input, shape index: {}]
  %s4 = inlined_call_operand.vmem [shape: f32[1,128], index: 4, kind: input, shape index: {}]
  %s5 = inlined_call_operand.hbm [shape: bf16[128,128], index: 5, kind: input, shape index: {}]
  %s6 = inlined_call_operand.vmem [shape: f32[1,128], index: 6, kind: input, shape index: {}]
  %s7 = inlined_call_operand.hbm [shape: f32[16,128], index: 7, kind: output, shape index: {}]
  %s8 = sld [smem:[#allocation0]]
  $region62: #{tpu_custom_call.1} parent=0
    _
  %s10 = ssub.s32 1, %s8
  %s11 = scalar_select 0, %s10, %s8
  $region1: #{tpu_custom_call.1} parent=0
    #allocation3 [shape = 'u8[4096]{0}', space=vmem, size = 0x1000, scoped, tag = 'input window, operand 0, single buffered']
    #allocation4 [shape = 's32[1]{0}', space=sflag, size = 0x4, scoped, tag = 'scoped memory for tpu_custom_call.1']
    #allocation5 [shape = 's32[1]{0}', space=sflag, size = 0x4, scoped, tag = 'scoped memory for tpu_custom_call.1']
    #allocation6 [shape = 'u8[32768]{0}', space=vmem, size = 0x8000, scoped, tag = 'input window, operand 1, single buffered']
    #allocation7 [shape = 's32[1]{0}', space=sflag, size = 0x4, scoped, tag = 'scoped memory for tpu_custom_call.1']
    #allocation8 [shape = 'u8[32768]{0}', space=vmem, size = 0x8000, scoped, tag = 'input window, operand 3, single buffered']
    #allocation9 [shape = 'u8[32768]{0}', space=vmem, size = 0x8000, scoped, tag = 'input window, operand 5, single buffered']
    #allocation10 [shape = 's32[1]{0}', space=sflag, size = 0x4, scoped, tag = 'scoped memory for tpu_custom_call.1']
    #allocation11 [shape = 'u8[8192]{0}', space=vmem, size = 0x2000, scoped, tag = 'output window, operand 0, single buffered']
    %12 = vsyncpa [#allocation4], 0
    %13 = vsyncpa [#allocation7], 0
    %14 = vsyncpa [#allocation10], 0
    %15 = vsyncpa [#allocation5], 0
    // Predicated region
    $region2: #{tpu_custom_call.1} parent=1 // pred_check
      _
    $region3: #{tpu_custom_call.1} parent=1 // pred_check_branch
      %17 = sbr.rel (0) target = $region5
    $region4: #{tpu_custom_call.1} parent=1 // pred_region
      %s19 = ssub.s32 128, 128
      %20 = vsyncadd [#allocation4], %s19
      %s21 = sshll.u32 [#allocation3], 4
      %s22 = int_to_ptr.vmem [resolvable:$true] %s21
      %27 = dma.hbm_to_vmem [thread:$0]  %s0, 128, %s22, [#allocation4], 64, 64, 4
    $region5: #{tpu_custom_call.1} parent=1 // pred_fallthru
      _
    // Predicated region
    $region6: #{tpu_custom_call.1} parent=1 // pred_check
      _
    $region7: #{tpu_custom_call.1} parent=1 // pred_check_branch
      %29 = sbr.rel (0) target = $region9
    $region8: #{tpu_custom_call.1} parent=1 // pred_region
      %s31 = ssub.s32 1024, 1024
      %32 = vsyncadd [#allocation7], %s31
      %s33 = sshll.u32 [#allocation6], 4
      %s34 = int_to_ptr.vmem [resolvable:$true] %s33
      %39 = dma.hbm_to_vmem [thread:$0]  %s1, 1024, %s34, [#allocation7], 64, 64, 4
    $region9: #{tpu_custom_call.1} parent=1 // pred_fallthru
      _
    // Predicated region
    $region10: #{tpu_custom_call.1} parent=1 // pred_check
      _
    $region11: #{tpu_custom_call.1} parent=1 // pred_check_branch
      %41 = sbr.rel (0) target = $region13
    $region12: #{tpu_custom_call.1} parent=1 // pred_region
      _
    $region13: #{tpu_custom_call.1} parent=1 // pred_fallthru
      _
    // Predicated region
    $region14: #{tpu_custom_call.1} parent=1 // pred_check
      _
    $region15: #{tpu_custom_call.1} parent=1 // pred_check_branch
      %43 = sbr.rel (0) target = $region17
    $region16: #{tpu_custom_call.1} parent=1 // pred_region
      %s45 = ssub.s32 1024, 1024
      %46 = vsyncadd [#allocation7], %s45
      %s47 = sshll.u32 [#allocation8], 4
      %s48 = int_to_ptr.vmem [resolvable:$true] %s47
      %53 = dma.hbm_to_vmem [thread:$0]  %s3, 1024, %s48, [#allocation7], 64, 64, 4
    $region17: #{tpu_custom_call.1} parent=1 // pred_fallthru
      _
    // Predicated region
    $region18: #{tpu_custom_call.1} parent=1 // pred_check
      _
    $region19: #{tpu_custom_call.1} parent=1 // pred_check_branch
      %55 = sbr.rel (0) target = $region21
    $region20: #{tpu_custom_call.1} parent=1 // pred_region
      _
    $region21: #{tpu_custom_call.1} parent=1 // pred_fallthru
      _
    // Predicated region
    $region22: #{tpu_custom_call.1} parent=1 // pred_check
      _
    $region23: #{tpu_custom_call.1} parent=1 // pred_check_branch
      %57 = sbr.rel (0) target = $region25
    $region24: #{tpu_custom_call.1} parent=1 // pred_region
      %s59 = ssub.s32 1024, 1024
      %60 = vsyncadd [#allocation10], %s59
      %s61 = sshll.u32 [#allocation9], 4
      %s62 = int_to_ptr.vmem [resolvable:$true] %s61
      %67 = dma.hbm_to_vmem [thread:$0]  %s5, 1024, %s62, [#allocation10], 64, 64, 4
    $region25: #{tpu_custom_call.1} parent=1 // pred_fallthru
      _
    // Predicated region
    $region26: #{tpu_custom_call.1} parent=1 // pred_check
      _
    $region27: #{tpu_custom_call.1} parent=1 // pred_check_branch
      %69 = sbr.rel (0) target = $region29
    $region28: #{tpu_custom_call.1} parent=1 // pred_region
      _
    $region29: #{tpu_custom_call.1} parent=1 // pred_fallthru
      _
    // Predicated region
    $region30: #{tpu_custom_call.1} parent=1 // pred_check
      _
    $region31: #{tpu_custom_call.1} parent=1 // pred_check_branch
      %71 = sbr.rel (0) target = $region33
    $region32: #{tpu_custom_call.1} parent=1 // pred_region
      %72 = dma.done [#allocation4], 128
    $region33: #{tpu_custom_call.1} parent=1 // pred_fallthru
      _
    // Predicated region
    $region34: #{tpu_custom_call.1} parent=1 // pred_check
      _
    $region35: #{tpu_custom_call.1} parent=1 // pred_check_branch
      %74 = sbr.rel (0) target = $region37
    $region36: #{tpu_custom_call.1} parent=1 // pred_region
      %75 = dma.done [#allocation7], 1024
    $region37: #{tpu_custom_call.1} parent=1 // pred_fallthru
      _
    // Predicated region
    $region38: #{tpu_custom_call.1} parent=1 // pred_check
      _
    $region39: #{tpu_custom_call.1} parent=1 // pred_check_branch
      %77 = sbr.rel (0) target = $region41
    $region40: #{tpu_custom_call.1} parent=1 // pred_region
      %78 = dma.done [#allocation7], 1024
    $region41: #{tpu_custom_call.1} parent=1 // pred_fallthru
      _
    // Predicated region
    $region42: #{tpu_custom_call.1} parent=1 // pred_check
      _
    $region43: #{tpu_custom_call.1} parent=1 // pred_check_branch
      %80 = sbr.rel (0) target = $region45
    $region44: #{tpu_custom_call.1} parent=1 // pred_region
      %81 = dma.done [#allocation10], 1024
    $region45: #{tpu_custom_call.1} parent=1 // pred_fallthru
      _
    %p83 = scmp.eq.s32.totalorder 0, 0
    // Predicated region
    $region46: #{tpu_custom_call.1} parent=1 // pred_check
      %p84 = pneg %p83
    $region47: #{tpu_custom_call.1} parent=1 // pred_check_branch
      %86 = sbr.rel (%p84) target = $region49
    $region48: #{tpu_custom_call.1} parent=1 // pred_region
      %87 = vst [vmem:[#allocation2] sm:$0xff] 0.0
      %88 = vst [vmem:[#allocation2 + $0x8] sm:$0xff] 0.0
    $region49: #{tpu_custom_call.1} parent=1 // pred_fallthru
      _
    %v89 = vld [vmem:[#allocation3] sm:$0xf]
    %v90 = vld [vmem:[#allocation3 + $0x4] sm:$0xf]
    %v91 = vld [vmem:[#allocation2] sm:$0xff]
    %v92 = vld [vmem:[#allocation2 + $0x8] sm:$0xff]
    %v93 = vld [vmem:[#allocation6] sm:$0xf]
    %v94 = vld [vmem:[#allocation6 + $0x4] sm:$0xf]
    %v95 = vld [vmem:[#allocation6 + $0x8] sm:$0xf]
    %v96 = vld [vmem:[#allocation6 + $0xc] sm:$0xf]
    %v97 = vld [vmem:[#allocation6 + $0x10] sm:$0xf]
    %v98 = vld [vmem:[#allocation6 + $0x14] sm:$0xf]
    %v99 = vld [vmem:[#allocation6 + $0x18] sm:$0xf]
    %v100 = vld [vmem:[#allocation6 + $0x1c] sm:$0xf]
    %v101 = vld [vmem:[#allocation6 + $0x20] sm:$0xf]
    %v102 = vld [vmem:[#allocation6 + $0x24] sm:$0xf]
    %v103 = vld [vmem:[#allocation6 + $0x28] sm:$0xf]
    %v104 = vld [vmem:[#allocation6 + $0x2c] sm:$0xf]
    %v105 = vld [vmem:[#allocation6 + $0x30] sm:$0xf]
    %v106 = vld [vmem:[#allocation6 + $0x34] sm:$0xf]
    %v107 = vld [vmem:[#allocation6 + $0x38] sm:$0xf]
    %v108 = vld [vmem:[#allocation6 + $0x3c] sm:$0xf]
    %v111 = vunpack.c.l.b16 %v89
    %v112 = vunpack.c.l.b16 %v90
    %v113 = vpack.c.b16 %v112, %v111
    %v131 = vunpack.c.l.b16 %v93
    %v132 = vunpack.c.l.b16 %v94
    %v133 = vunpack.c.l.b16 %v95
    %v134 = vunpack.c.l.b16 %v96
    %v135 = vunpack.c.l.b16 %v97
    %v136 = vunpack.c.l.b16 %v98
    %v137 = vunpack.c.l.b16 %v99
    %v138 = vunpack.c.l.b16 %v100
    %v139 = vunpack.c.l.b16 %v101
    %v140 = vunpack.c.l.b16 %v102
    %v141 = vunpack.c.l.b16 %v103
    %v142 = vunpack.c.l.b16 %v104
    %v143 = vunpack.c.l.b16 %v105
    %v144 = vunpack.c.l.b16 %v106
    %v145 = vunpack.c.l.b16 %v107
    %v146 = vunpack.c.l.b16 %v108
    %v147 = vpack.c.b16 %v132, %v131
    %v148 = vpack.c.b16 %v134, %v133
    %v149 = vpack.c.b16 %v136, %v135
    %v150 = vpack.c.b16 %v138, %v137
    %v151 = vpack.c.b16 %v140, %v139
    %v152 = vpack.c.b16 %v142, %v141
    %v153 = vpack.c.b16 %v144, %v143
    %v154 = vpack.c.b16 %v146, %v145
    %163 = vmatprep.subr.bf16.mxu0 0
    %164 = vmatpush1.bf16.msra.mxu0 %v147
    %165 = vmatprep.subr.bf16.mxu0 0
    %166 = vmatpush1.bf16.msra.mxu0 %v148
    %167 = vmatprep.subr.bf16.mxu0 0
    %168 = vmatpush1.bf16.msra.mxu0 %v149
    %169 = vmatprep.subr.bf16.mxu0 0
    %170 = vmatpush1.bf16.msra.mxu0 %v150
    %171 = vmatprep.subr.bf16.mxu0 0
    %172 = vmatpush1.bf16.msra.mxu0 %v151
    %173 = vmatprep.subr.bf16.mxu0 0
    %174 = vmatpush1.bf16.msra.mxu0 %v152
    %175 = vmatprep.subr.bf16.mxu0 0
    %176 = vmatpush1.bf16.msra.mxu0 %v153
    %177 = vmatprep.subr.bf16.mxu0 0
    %178 = vmatpush1.bf16.msra.mxu0 %v154
    %179 = vmatprep.subr.bf16.mxu0 0
    %180 = vmatpush1.bf16.msra.mxu0 0
    %181 = vmatprep.subr.bf16.mxu0 0
    %182 = vmatpush1.bf16.msra.mxu0 0
    %183 = vmatprep.subr.bf16.mxu0 0
    %184 = vmatpush1.bf16.msra.mxu0 0
    %185 = vmatprep.subr.bf16.mxu0 0
    %186 = vmatpush1.bf16.msra.mxu0 0
    %187 = vmatprep.subr.bf16.mxu0 0
    %188 = vmatpush1.bf16.msra.mxu0 0
    %189 = vmatprep.subr.bf16.mxu0 0
    %190 = vmatpush1.bf16.msra.mxu0 0
    %191 = vmatprep.subr.bf16.mxu0 0
    %192 = vmatpush1.bf16.msra.mxu0 0
    %193 = vmatprep.subr.bf16.mxu0 0
    %194 = vmatpush1.bf16.msra.mxu0 0
    %195 = vmatprep.mubr.bf16.mxu0 0
    %196 = vmatmul.mubr.bf16.gmra.mrb[0].mxu0 %v113
    %v197 = vpop.f32.mrb[0].mxu0
    %v198 = vadd.f32 0.0, %v197
    %v199 = vpop.f32.mrb[0].mxu0
    %v200 = vpop.f32.mrb[0].mxu0
    %v201 = vadd.f32 0.0, %v200
    %v202 = vpop.f32.mrb[0].mxu0
    %203 = vdwg.mxu0
    %v204 = vadd.f32 %v91, %v198
    %v205 = vadd.f32 %v92, %v201
    %206 = vst [vmem:[#allocation2] sm:$0xff] %v204
    %207 = vst [vmem:[#allocation2 + $0x8] sm:$0xff] %v205
    // Predicated region
    $region50: #{tpu_custom_call.1} parent=1 // pred_check
      %p208 = pneg %p83
    $region51: #{tpu_custom_call.1} parent=1 // pred_check_branch
      %210 = sbr.rel (%p208) target = $region53
    $region52: #{tpu_custom_call.1} parent=1 // pred_region
      %v211 = vld [vmem:[#allocation2] sm:$0xff]
      %v212 = vld [vmem:[#allocation2 + $0x8] sm:$0xff]
      %v213 = vld [vmem:[%s2] sm:$0x1]
      %v215 = vlaneseq
      %v216 = vshrl.u32 %v215, 7
      %v217 = vsub.s32 0, %v216
      %v218 = vrot.slane %v213, %v217
      %v220 = vadd.f32 %v211, %v218
      %v221 = vadd.f32 %v212, %v218
      %v222 = vmax.f32 %v220, 0.0
      %v223 = vmax.f32 %v221, 0.0
      %v224 = vpack.c.bf16 %v223, %v222
      %v225 = vld [vmem:[#allocation8] sm:$0xf]
      %v226 = vld [vmem:[#allocation8 + $0x4] sm:$0xf]
      %v227 = vld [vmem:[#allocation8 + $0x8] sm:$0xf]
      %v228 = vld [vmem:[#allocation8 + $0xc] sm:$0xf]
      %v229 = vld [vmem:[#allocation8 + $0x10] sm:$0xf]
      %v230 = vld [vmem:[#allocation8 + $0x14] sm:$0xf]
      %v231 = vld [vmem:[#allocation8 + $0x18] sm:$0xf]
      %v232 = vld [vmem:[#allocation8 + $0x1c] sm:$0xf]
      %v233 = vld [vmem:[#allocation8 + $0x20] sm:$0xf]
      %v234 = vld [vmem:[#allocation8 + $0x24] sm:$0xf]
      %v235 = vld [vmem:[#allocation8 + $0x28] sm:$0xf]
      %v236 = vld [vmem:[#allocation8 + $0x2c] sm:$0xf]
      %v237 = vld [vmem:[#allocation8 + $0x30] sm:$0xf]
      %v238 = vld [vmem:[#allocation8 + $0x34] sm:$0xf]
      %v239 = vld [vmem:[#allocation8 + $0x38] sm:$0xf]
      %v240 = vld [vmem:[#allocation8 + $0x3c] sm:$0xf]
      %v241 = vld [vmem:[%s4] sm:$0x1]
      %v243 = vlaneseq
      %v244 = vshrl.u32 %v243, 7
      %v245 = vsub.s32 0, %v244
      %v246 = vrot.slane %v241, %v245
      %v264 = vunpack.c.l.b16 %v225
      %v265 = vunpack.c.l.b16 %v226
      %v266 = vunpack.c.l.b16 %v227
      %v267 = vunpack.c.l.b16 %v228
      %v268 = vunpack.c.l.b16 %v229
      %v269 = vunpack.c.l.b16 %v230
      %v270 = vunpack.c.l.b16 %v231
      %v271 = vunpack.c.l.b16 %v232
      %v272 = vunpack.c.l.b16 %v233
      %v273 = vunpack.c.l.b16 %v234
      %v274 = vunpack.c.l.b16 %v235
      %v275 = vunpack.c.l.b16 %v236
      %v276 = vunpack.c.l.b16 %v237
      %v277 = vunpack.c.l.b16 %v238
      %v278 = vunpack.c.l.b16 %v239
      %v279 = vunpack.c.l.b16 %v240
      %v280 = vpack.c.b16 %v265, %v264
      %v281 = vpack.c.b16 %v267, %v266
      %v282 = vpack.c.b16 %v269, %v268
      %v283 = vpack.c.b16 %v271, %v270
      %v284 = vpack.c.b16 %v273, %v272
      %v285 = vpack.c.b16 %v275, %v274
      %v286 = vpack.c.b16 %v277, %v276
      %v287 = vpack.c.b16 %v279, %v278
      %296 = vmatprep.subr.bf16.mxu0 0
      %297 = vmatpush1.bf16.msra.mxu0 %v280
      %298 = vmatprep.subr.bf16.mxu0 0
      %299 = vmatpush1.bf16.msra.mxu0 %v281
      %300 = vmatprep.subr.bf16.mxu0 0
      %301 = vmatpush1.bf16.msra.mxu0 %v282
      %302 = vmatprep.subr.bf16.mxu0 0
      %303 = vmatpush1.bf16.msra.mxu0 %v283
      %304 = vmatprep.subr.bf16.mxu0 0
      %305 = vmatpush1.bf16.msra.mxu0 %v284
      %306 = vmatprep.subr.bf16.mxu0 0
      %307 = vmatpush1.bf16.msra.mxu0 %v285
      %308 = vmatprep.subr.bf16.mxu0 0
      %309 = vmatpush1.bf16.msra.mxu0 %v286
      %310 = vmatprep.subr.bf16.mxu0 0
      %311 = vmatpush1.bf16.msra.mxu0 %v287
      %312 = vmatprep.subr.bf16.mxu0 0
      %313 = vmatpush1.bf16.msra.mxu0 0
      %314 = vmatprep.subr.bf16.mxu0 0
      %315 = vmatpush1.bf16.msra.mxu0 0
      %316 = vmatprep.subr.bf16.mxu0 0
      %317 = vmatpush1.bf16.msra.mxu0 0
      %318 = vmatprep.subr.bf16.mxu0 0
      %319 = vmatpush1.bf16.msra.mxu0 0
      %320 = vmatprep.subr.bf16.mxu0 0
      %321 = vmatpush1.bf16.msra.mxu0 0
      %322 = vmatprep.subr.bf16.mxu0 0
      %323 = vmatpush1.bf16.msra.mxu0 0
      %324 = vmatprep.subr.bf16.mxu0 0
      %325 = vmatpush1.bf16.msra.mxu0 0
      %326 = vmatprep.subr.bf16.mxu0 0
      %327 = vmatpush1.bf16.msra.mxu0 0
      %328 = vmatprep.mubr.bf16.mxu0 0
      %329 = vmatmul.mubr.bf16.gmra.mrb[0].mxu0 %v224
      %v330 = vpop.f32.mrb[0].mxu0
      %v331 = vadd.f32 %v246, %v330
      %v332 = vpop.f32.mrb[0].mxu0
      %v333 = vpop.f32.mrb[0].mxu0
      %v334 = vadd.f32 %v246, %v333
      %v335 = vpop.f32.mrb[0].mxu0
      %336 = vdwg.mxu0
      %v337 = vmax.f32 %v331, 0.0
      %v338 = vmax.f32 %v334, 0.0
      %v339 = vpack.c.bf16 %v338, %v337
      %v340 = vld [vmem:[#allocation9] sm:$0xf]
      %v341 = vld [vmem:[#allocation9 + $0x4] sm:$0xf]
      %v342 = vld [vmem:[#allocation9 + $0x8] sm:$0xf]
      %v343 = vld [vmem:[#allocation9 + $0xc] sm:$0xf]
      %v344 = vld [vmem:[#allocation9 + $0x10] sm:$0xf]
      %v345 = vld [vmem:[#allocation9 + $0x14] sm:$0xf]
      %v346 = vld [vmem:[#allocation9 + $0x18] sm:$0xf]
      %v347 = vld [vmem:[#allocation9 + $0x1c] sm:$0xf]
      %v348 = vld [vmem:[#allocation9 + $0x20] sm:$0xf]
      %v349 = vld [vmem:[#allocation9 + $0x24] sm:$0xf]
      %v350 = vld [vmem:[#allocation9 + $0x28] sm:$0xf]
      %v351 = vld [vmem:[#allocation9 + $0x2c] sm:$0xf]
      %v352 = vld [vmem:[#allocation9 + $0x30] sm:$0xf]
      %v353 = vld [vmem:[#allocation9 + $0x34] sm:$0xf]
      %v354 = vld [vmem:[#allocation9 + $0x38] sm:$0xf]
      %v355 = vld [vmem:[#allocation9 + $0x3c] sm:$0xf]
      %v356 = vld [vmem:[%s6] sm:$0x1]
      %v358 = vlaneseq
      %v359 = vshrl.u32 %v358, 7
      %v360 = vsub.s32 0, %v359
      %v361 = vrot.slane %v356, %v360
      %v379 = vunpack.c.l.b16 %v340
      %v380 = vunpack.c.l.b16 %v341
      %v381 = vunpack.c.l.b16 %v342
      %v382 = vunpack.c.l.b16 %v343
      %v383 = vunpack.c.l.b16 %v344
      %v384 = vunpack.c.l.b16 %v345
      %v385 = vunpack.c.l.b16 %v346
      %v386 = vunpack.c.l.b16 %v347
      %v387 = vunpack.c.l.b16 %v348
      %v388 = vunpack.c.l.b16 %v349
      %v389 = vunpack.c.l.b16 %v350
      %v390 = vunpack.c.l.b16 %v351
      %v391 = vunpack.c.l.b16 %v352
      %v392 = vunpack.c.l.b16 %v353
      %v393 = vunpack.c.l.b16 %v354
      %v394 = vunpack.c.l.b16 %v355
      %v395 = vpack.c.b16 %v380, %v379
      %v396 = vpack.c.b16 %v382, %v381
      %v397 = vpack.c.b16 %v384, %v383
      %v398 = vpack.c.b16 %v386, %v385
      %v399 = vpack.c.b16 %v388, %v387
      %v400 = vpack.c.b16 %v390, %v389
      %v401 = vpack.c.b16 %v392, %v391
      %v402 = vpack.c.b16 %v394, %v393
      %411 = vmatprep.subr.bf16.mxu0 0
      %412 = vmatpush1.bf16.msra.mxu0 %v395
      %413 = vmatprep.subr.bf16.mxu0 0
      %414 = vmatpush1.bf16.msra.mxu0 %v396
      %415 = vmatprep.subr.bf16.mxu0 0
      %416 = vmatpush1.bf16.msra.mxu0 %v397
      %417 = vmatprep.subr.bf16.mxu0 0
      %418 = vmatpush1.bf16.msra.mxu0 %v398
      %419 = vmatprep.subr.bf16.mxu0 0
      %420 = vmatpush1.bf16.msra.mxu0 %v399
      %421 = vmatprep.subr.bf16.mxu0 0
      %422 = vmatpush1.bf16.msra.mxu0 %v400
      %423 = vmatprep.subr.bf16.mxu0 0
      %424 = vmatpush1.bf16.msra.mxu0 %v401
      %425 = vmatprep.subr.bf16.mxu0 0
      %426 = vmatpush1.bf16.msra.mxu0 %v402
      %427 = vmatprep.subr.bf16.mxu0 0
      %428 = vmatpush1.bf16.msra.mxu0 0
      %429 = vmatprep.subr.bf16.mxu0 0
      %430 = vmatpush1.bf16.msra.mxu0 0
      %431 = vmatprep.subr.bf16.mxu0 0
      %432 = vmatpush1.bf16.msra.mxu0 0
      %433 = vmatprep.subr.bf16.mxu0 0
      %434 = vmatpush1.bf16.msra.mxu0 0
      %435 = vmatprep.subr.bf16.mxu0 0
      %436 = vmatpush1.bf16.msra.mxu0 0
      %437 = vmatprep.subr.bf16.mxu0 0
      %438 = vmatpush1.bf16.msra.mxu0 0
      %439 = vmatprep.subr.bf16.mxu0 0
      %440 = vmatpush1.bf16.msra.mxu0 0
      %441 = vmatprep.subr.bf16.mxu0 0
      %442 = vmatpush1.bf16.msra.mxu0 0
      %443 = vmatprep.mubr.bf16.mxu0 0
      %444 = vmatmul.mubr.bf16.gmra.mrb[0].mxu0 %v339
      %v445 = vpop.f32.mrb[0].mxu0
      %v446 = vadd.f32 %v361, %v445
      %v447 = vpop.f32.mrb[0].mxu0
      %v448 = vpop.f32.mrb[0].mxu0
      %v449 = vadd.f32 %v361, %v448
      %v450 = vpop.f32.mrb[0].mxu0
      %451 = vdwg.mxu0
      %452 = vmax.xlane.f32.xlu0 %v446
      %v453 = vpop.xlane.xlu0 %452
      %454 = vmax.xlane.f32.xlu0 %v449
      %v455 = vpop.xlane.xlu0 %454
      %v456 = vsub.f32 %v446, %v453
      %v457 = vsub.f32 %v449, %v455
      %v458 = vmul.f32 %v456, 1.442695
      %v459 = vpow.pop %v458
      %v460 = vmul.f32 %v457, 1.442695
      %v461 = vpow.pop %v460
      %462 = vadd.xlane.f32.xlu0 %v459
      %v463 = vpop.xlane.xlu0 %462
      %464 = vadd.xlane.f32.xlu0 %v461
      %v465 = vpop.xlane.xlu0 %464
      %v466 = vrcp.pop %v463
      %v467 = vmul.f32 %v459, %v466
      %v468 = vrcp.pop %v465
      %v469 = vmul.f32 %v461, %v468
      %470 = vst [vmem:[#allocation11] sm:$0xff] %v467
      %471 = vst [vmem:[#allocation11 + $0x8] sm:$0xff] %v469
    $region53: #{tpu_custom_call.1} parent=1 // pred_fallthru
      _
    // Predicated region
    $region54: #{tpu_custom_call.1} parent=1 // pred_check
      _
    $region55: #{tpu_custom_call.1} parent=1 // pred_check_branch
      %473 = sbr.rel (0) target = $region57
    $region56: #{tpu_custom_call.1} parent=1 // pred_region
      %s475 = ssub.s32 256, 256
      %476 = vsyncadd [#allocation5], %s475
      %s477 = sshll.u32 [#allocation11], 4
      %s478 = int_to_ptr.vmem [resolvable:$true] %s477
      %483 = dma.vmem_to_hbm [thread:$0]  %s478, 256, %s7, [#allocation5], 128, 128, 8
    $region57: #{tpu_custom_call.1} parent=1 // pred_fallthru
      _
    // Predicated region
    $region58: #{tpu_custom_call.1} parent=1 // pred_check
      _
    $region59: #{tpu_custom_call.1} parent=1 // pred_check_branch
      %485 = sbr.rel (0) target = $region61
    $region60: #{tpu_custom_call.1} parent=1 // pred_region
      %486 = dma.done [#allocation5], 256
    $region61: #{tpu_custom_call.1} parent=1 // pred_fallthru
      _
    %487 = vsyncpa [#allocation4], 1
    %488 = vsyncpa [#allocation7], 1
    %489 = vsyncpa [#allocation10], 1
    %490 = vsyncpa [#allocation5], 1

// kernel: tpu_custom_call.1
$region0: #{tpu_custom_call.1}
  #allocation0 [shape = 'u32[]', space=smem, size = 0x4, offset = 0x4, fixed_abs, tag = 'smem constant byte address 0x4 - core index']
  #allocation1 [shape = 'u32[144,128]{1,0:T(1,128)}', space=vmem, size = 0x12000, scoped, tag = 'internal scratch']
  #allocation2 [shape = 'f32[16,128]{1,0:T(8,128)}', space=vmem, size = 0x2000, scoped, tag = 'scratch operand']
  %s0 = inlined_call_operand.hbm [shape: bf16[16,128], index: 0, kind: input, shape index: {}]
  %s1 = inlined_call_operand.hbm [shape: bf16[128,128], index: 1, kind: input, shape index: {}]
  %s2 = inlined_call_operand.vmem [shape: f32[1,128], index: 2, kind: input, shape index: {}]
  %s3 = inlined_call_operand.hbm [shape: bf16[128,128], index: 3, kind: input, shape index: {}]
  %s4 = inlined_call_operand.vmem [shape: f32[1,128], index: 4, kind: input, shape index: {}]
  %s5 = inlined_call_operand.hbm [shape: bf16[128,128], index: 5, kind: input, shape index: {}]
  %s6 = inlined_call_operand.vmem [shape: f32[1,128], index: 6, kind: input, shape index: {}]
  %s7 = inlined_call_operand.hbm [shape: f32[16,128], index: 7, kind: output, shape index: {}]
  %s8 = sld [smem:[#allocation0]]
  $region62: #{tpu_custom_call.1} parent=0
    _
  %s10 = ssub.s32 1, %s8
  %s11 = scalar_select 0, %s10, %s8
  $region1: #{tpu_custom_call.1} parent=0
    #allocation3 [shape = 'u8[4096]{0}', space=vmem, size = 0x1000, scoped, tag = 'input window, operand 0, single buffered']
    #allocation4 [shape = 's32[1]{0}', space=sflag, size = 0x4, scoped, tag = 'scoped memory for tpu_custom_call.1']
    #allocation5 [shape = 's32[1]{0}', space=sflag, size = 0x4, scoped, tag = 'scoped memory for tpu_custom_call.1']
    #allocation6 [shape = 'u8[32768]{0}', space=vmem, size = 0x8000, scoped, tag = 'input window, operand 1, single buffered']
    #allocation7 [shape = 's32[1]{0}', space=sflag, size = 0x4, scoped, tag = 'scoped memory for tpu_custom_call.1']
    #allocation8 [shape = 'u8[32768]{0}', space=vmem, size = 0x8000, scoped, tag = 'input window, operand 3, single buffered']
    #allocation9 [shape = 'u8[32768]{0}', space=vmem, size = 0x8000, scoped, tag = 'input window, operand 5, single buffered']
    #allocation10 [shape = 's32[1]{0}', space=sflag, size = 0x4, scoped, tag = 'scoped memory for tpu_custom_call.1']
    #allocation11 [shape = 'u8[8192]{0}', space=vmem, size = 0x2000, scoped, tag = 'output window, operand 0, single buffered']
    %12 = vsyncpa [#allocation4], 0
    %13 = vsyncpa [#allocation7], 0
    %14 = vsyncpa [#allocation10], 0
    %15 = vsyncpa [#allocation5], 0
    // Predicated region
    $region2: #{tpu_custom_call.1} parent=1 // pred_check
      _
    $region3: #{tpu_custom_call.1} parent=1 // pred_check_branch
      %17 = sbr.rel (0) target = $region5
    $region4: #{tpu_custom_call.1} parent=1 // pred_region
      %s19 = ssub.s32 128, 128
      %20 = vsyncadd [#allocation4], %s19
      %s21 = sshll.u32 [#allocation3], 4
      %s22 = int_to_ptr.vmem [resolvable:$true] %s21
      %27 = dma.hbm_to_vmem [thread:$0]  %s0, 128, %s22, [#allocation4], 64, 64, 4
    $region5: #{tpu_custom_call.1} parent=1 // pred_fallthru
      _
    // Predicated region
    $region6: #{tpu_custom_call.1} parent=1 // pred_check
      _
    $region7: #{tpu_custom_call.1} parent=1 // pred_check_branch
      %29 = sbr.rel (0) target = $region9
    $region8: #{tpu_custom_call.1} parent=1 // pred_region
      %s31 = ssub.s32 1024, 1024
      %32 = vsyncadd [#allocation7], %s31
      %s33 = sshll.u32 [#allocation6], 4
      %s34 = int_to_ptr.vmem [resolvable:$true] %s33
      %39 = dma.hbm_to_vmem [thread:$0]  %s1, 1024, %s34, [#allocation7], 64, 64, 4
    $region9: #{tpu_custom_call.1} parent=1 // pred_fallthru
      _
    // Predicated region
    $region10: #{tpu_custom_call.1} parent=1 // pred_check
      _
    $region11: #{tpu_custom_call.1} parent=1 // pred_check_branch
      %41 = sbr.rel (0) target = $region13
    $region12: #{tpu_custom_call.1} parent=1 // pred_region
      _
    $region13: #{tpu_custom_call.1} parent=1 // pred_fallthru
      _
    // Predicated region
    $region14: #{tpu_custom_call.1} parent=1 // pred_check
      _
    $region15: #{tpu_custom_call.1} parent=1 // pred_check_branch
      %43 = sbr.rel (0) target = $region17
    $region16: #{tpu_custom_call.1} parent=1 // pred_region
      %s45 = ssub.s32 1024, 1024
      %46 = vsyncadd [#allocation7], %s45
      %s47 = sshll.u32 [#allocation8], 4
      %s48 = int_to_ptr.vmem [resolvable:$true] %s47
      %53 = dma.hbm_to_vmem [thread:$0]  %s3, 1024, %s48, [#allocation7], 64, 64, 4
    $region17: #{tpu_custom_call.1} parent=1 // pred_fallthru
      _
    // Predicated region
    $region18: #{tpu_custom_call.1} parent=1 // pred_check
      _
    $region19: #{tpu_custom_call.1} parent=1 // pred_check_branch
      %55 = sbr.rel (0) target = $region21
    $region20: #{tpu_custom_call.1} parent=1 // pred_region
      _
    $region21: #{tpu_custom_call.1} parent=1 // pred_fallthru
      _
    // Predicated region
    $region22: #{tpu_custom_call.1} parent=1 // pred_check
      _
    $region23: #{tpu_custom_call.1} parent=1 // pred_check_branch
      %57 = sbr.rel (0) target = $region25
    $region24: #{tpu_custom_call.1} parent=1 // pred_region
      %s59 = ssub.s32 1024, 1024
      %60 = vsyncadd [#allocation10], %s59
      %s61 = sshll.u32 [#allocation9], 4
      %s62 = int_to_ptr.vmem [resolvable:$true] %s61
      %67 = dma.hbm_to_vmem [thread:$0]  %s5, 1024, %s62, [#allocation10], 64, 64, 4
    $region25: #{tpu_custom_call.1} parent=1 // pred_fallthru
      _
    // Predicated region
    $region26: #{tpu_custom_call.1} parent=1 // pred_check
      _
    $region27: #{tpu_custom_call.1} parent=1 // pred_check_branch
      %69 = sbr.rel (0) target = $region29
    $region28: #{tpu_custom_call.1} parent=1 // pred_region
      _
    $region29: #{tpu_custom_call.1} parent=1 // pred_fallthru
      _
    // Predicated region
    $region30: #{tpu_custom_call.1} parent=1 // pred_check
      _
    $region31: #{tpu_custom_call.1} parent=1 // pred_check_branch
      %71 = sbr.rel (0) target = $region33
    $region32: #{tpu_custom_call.1} parent=1 // pred_region
      %72 = dma.done [#allocation4], 128
    $region33: #{tpu_custom_call.1} parent=1 // pred_fallthru
      _
    // Predicated region
    $region34: #{tpu_custom_call.1} parent=1 // pred_check
      _
    $region35: #{tpu_custom_call.1} parent=1 // pred_check_branch
      %74 = sbr.rel (0) target = $region37
    $region36: #{tpu_custom_call.1} parent=1 // pred_region
      %75 = dma.done [#allocation7], 1024
    $region37: #{tpu_custom_call.1} parent=1 // pred_fallthru
      _
    // Predicated region
    $region38: #{tpu_custom_call.1} parent=1 // pred_check
      _
    $region39: #{tpu_custom_call.1} parent=1 // pred_check_branch
      %77 = sbr.rel (0) target = $region41
    $region40: #{tpu_custom_call.1} parent=1 // pred_region
      %78 = dma.done [#allocation7], 1024
    $region41: #{tpu_custom_call.1} parent=1 // pred_fallthru
      _
    // Predicated region
    $region42: #{tpu_custom_call.1} parent=1 // pred_check
      _
    $region43: #{tpu_custom_call.1} parent=1 // pred_check_branch
      %80 = sbr.rel (0) target = $region45
    $region44: #{tpu_custom_call.1} parent=1 // pred_region
      %81 = dma.done [#allocation10], 1024
    $region45: #{tpu_custom_call.1} parent=1 // pred_fallthru
      _
    %p83 = scmp.eq.s32.totalorder 0, 0
    // Predicated region
    $region46: #{tpu_custom_call.1} parent=1 // pred_check
      %p84 = pneg %p83
    $region47: #{tpu_custom_call.1} parent=1 // pred_check_branch
      %86 = sbr.rel (%p84) target = $region49
    $region48: #{tpu_custom_call.1} parent=1 // pred_region
      %87 = vst [vmem:[#allocation2] sm:$0xff] 0.0
      %88 = vst [vmem:[#allocation2 + $0x8] sm:$0xff] 0.0
    $region49: #{tpu_custom_call.1} parent=1 // pred_fallthru
      _
    %v89 = vld [vmem:[#allocation3] sm:$0xf]
    %v90 = vld [vmem:[#allocation3 + $0x4] sm:$0xf]
    %v91 = vld [vmem:[#allocation2] sm:$0xff]
    %v92 = vld [vmem:[#allocation2 + $0x8] sm:$0xff]
    %v93 = vld [vmem:[#allocation6] sm:$0xf]
    %v94 = vld [vmem:[#allocation6 + $0x4] sm:$0xf]
    %v95 = vld [vmem:[#allocation6 + $0x8] sm:$0xf]
    %v96 = vld [vmem:[#allocation6 + $0xc] sm:$0xf]
    %v97 = vld [vmem:[#allocation6 + $0x10] sm:$0xf]
    %v98 = vld [vmem:[#allocation6 + $0x14] sm:$0xf]
    %v99 = vld [vmem:[#allocation6 + $0x18] sm:$0xf]
    %v100 = vld [vmem:[#allocation6 + $0x1c] sm:$0xf]
    %v101 = vld [vmem:[#allocation6 + $0x20] sm:$0xf]
    %v102 = vld [vmem:[#allocation6 + $0x24] sm:$0xf]
    %v103 = vld [vmem:[#allocation6 + $0x28] sm:$0xf]
    %v104 = vld [vmem:[#allocation6 + $0x2c] sm:$0xf]
    %v105 = vld [vmem:[#allocation6 + $0x30] sm:$0xf]
    %v106 = vld [vmem:[#allocation6 + $0x34] sm:$0xf]
    %v107 = vld [vmem:[#allocation6 + $0x38] sm:$0xf]
    %v108 = vld [vmem:[#allocation6 + $0x3c] sm:$0xf]
    %v111 = vunpack.c.l.b16 %v89
    %v112 = vunpack.c.l.b16 %v90
    %v113 = vpack.c.b16 %v112, %v111
    %v131 = vunpack.c.l.b16 %v93
    %v132 = vunpack.c.l.b16 %v94
    %v133 = vunpack.c.l.b16 %v95
    %v134 = vunpack.c.l.b16 %v96
    %v135 = vunpack.c.l.b16 %v97
    %v136 = vunpack.c.l.b16 %v98
    %v137 = vunpack.c.l.b16 %v99
    %v138 = vunpack.c.l.b16 %v100
    %v139 = vunpack.c.l.b16 %v101
    %v140 = vunpack.c.l.b16 %v102
    %v141 = vunpack.c.l.b16 %v103
    %v142 = vunpack.c.l.b16 %v104
    %v143 = vunpack.c.l.b16 %v105
    %v144 = vunpack.c.l.b16 %v106
    %v145 = vunpack.c.l.b16 %v107
    %v146 = vunpack.c.l.b16 %v108
    %v147 = vpack.c.b16 %v132, %v131
    %v148 = vpack.c.b16 %v134, %v133
    %v149 = vpack.c.b16 %v136, %v135
    %v150 = vpack.c.b16 %v138, %v137
    %v151 = vpack.c.b16 %v140, %v139
    %v152 = vpack.c.b16 %v142, %v141
    %v153 = vpack.c.b16 %v144, %v143
    %v154 = vpack.c.b16 %v146, %v145
    %163 = vmatprep.subr.bf16.mxu0 0
    %164 = vmatpush1.bf16.msra.mxu0 %v147
    %165 = vmatprep.subr.bf16.mxu0 0
    %166 = vmatpush1.bf16.msra.mxu0 %v148
    %167 = vmatprep.subr.bf16.mxu0 0
    %168 = vmatpush1.bf16.msra.mxu0 %v149
    %169 = vmatprep.subr.bf16.mxu0 0
    %170 = vmatpush1.bf16.msra.mxu0 %v150
    %171 = vmatprep.subr.bf16.mxu0 0
    %172 = vmatpush1.bf16.msra.mxu0 %v151
    %173 = vmatprep.subr.bf16.mxu0 0
    %174 = vmatpush1.bf16.msra.mxu0 %v152
    %175 = vmatprep.subr.bf16.mxu0 0
    %176 = vmatpush1.bf16.msra.mxu0 %v153
    %177 = vmatprep.subr.bf16.mxu0 0
    %178 = vmatpush1.bf16.msra.mxu0 %v154
    %179 = vmatprep.subr.bf16.mxu0 0
    %180 = vmatpush1.bf16.msra.mxu0 0
    %181 = vmatprep.subr.bf16.mxu0 0
    %182 = vmatpush1.bf16.msra.mxu0 0
    %183 = vmatprep.subr.bf16.mxu0 0
    %184 = vmatpush1.bf16.msra.mxu0 0
    %185 = vmatprep.subr.bf16.mxu0 0
    %186 = vmatpush1.bf16.msra.mxu0 0
    %187 = vmatprep.subr.bf16.mxu0 0
    %188 = vmatpush1.bf16.msra.mxu0 0
    %189 = vmatprep.subr.bf16.mxu0 0
    %190 = vmatpush1.bf16.msra.mxu0 0
    %191 = vmatprep.subr.bf16.mxu0 0
    %192 = vmatpush1.bf16.msra.mxu0 0
    %193 = vmatprep.subr.bf16.mxu0 0
    %194 = vmatpush1.bf16.msra.mxu0 0
    %195 = vmatprep.mubr.bf16.mxu0 0
    %196 = vmatmul.mubr.bf16.gmra.mrb[0].mxu0 %v113
    %v197 = vpop.f32.mrb[0].mxu0
    %v198 = vadd.f32 0.0, %v197
    %v199 = vpop.f32.mrb[0].mxu0
    %v200 = vpop.f32.mrb[0].mxu0
    %v201 = vadd.f32 0.0, %v200
    %v202 = vpop.f32.mrb[0].mxu0
    %203 = vdwg.mxu0
    %v204 = vadd.f32 %v91, %v198
    %v205 = vadd.f32 %v92, %v201
    %206 = vst [vmem:[#allocation2] sm:$0xff] %v204
    %207 = vst [vmem:[#allocation2 + $0x8] sm:$0xff] %v205
    // Predicated region
    $region50: #{tpu_custom_call.1} parent=1 // pred_check
      %p208 = pneg %p83
    $region51: #{tpu_custom_call.1} parent=1 // pred_check_branch
      %210 = sbr.rel (%p208) target = $region53
    $region52: #{tpu_custom_call.1} parent=1 // pred_region
      %v211 = vld [vmem:[#allocation2] sm:$0xff]
      %v212 = vld [vmem:[#allocation2 + $0x8] sm:$0xff]
      %v213 = vld [vmem:[%s2] sm:$0x1]
      %v215 = vlaneseq
      %v216 = vshrl.u32 %v215, 7
      %v217 = vsub.s32 0, %v216
      %v218 = vrot.slane %v213, %v217
      %v220 = vadd.f32 %v211, %v218
      %v221 = vadd.f32 %v212, %v218
      %v222 = vmax.f32 %v220, 0.0
      %v223 = vmax.f32 %v221, 0.0
      %v224 = vpack.c.bf16 %v223, %v222
      %v225 = vld [vmem:[#allocation8] sm:$0xf]
      %v226 = vld [vmem:[#allocation8 + $0x4] sm:$0xf]
      %v227 = vld [vmem:[#allocation8 + $0x8] sm:$0xf]
      %v228 = vld [vmem:[#allocation8 + $0xc] sm:$0xf]
      %v229 = vld [vmem:[#allocation8 + $0x10] sm:$0xf]
      %v230 = vld [vmem:[#allocation8 + $0x14] sm:$0xf]
      %v231 = vld [vmem:[#allocation8 + $0x18] sm:$0xf]
      %v232 = vld [vmem:[#allocation8 + $0x1c] sm:$0xf]
      %v233 = vld [vmem:[#allocation8 + $0x20] sm:$0xf]
      %v234 = vld [vmem:[#allocation8 + $0x24] sm:$0xf]
      %v235 = vld [vmem:[#allocation8 + $0x28] sm:$0xf]
      %v236 = vld [vmem:[#allocation8 + $0x2c] sm:$0xf]
      %v237 = vld [vmem:[#allocation8 + $0x30] sm:$0xf]
      %v238 = vld [vmem:[#allocation8 + $0x34] sm:$0xf]
      %v239 = vld [vmem:[#allocation8 + $0x38] sm:$0xf]
      %v240 = vld [vmem:[#allocation8 + $0x3c] sm:$0xf]
      %v241 = vld [vmem:[%s4] sm:$0x1]
      %v243 = vlaneseq
      %v244 = vshrl.u32 %v243, 7
      %v245 = vsub.s32 0, %v244
      %v246 = vrot.slane %v241, %v245
      %v264 = vunpack.c.l.b16 %v225
      %v265 = vunpack.c.l.b16 %v226
      %v266 = vunpack.c.l.b16 %v227
      %v267 = vunpack.c.l.b16 %v228
      %v268 = vunpack.c.l.b16 %v229
      %v269 = vunpack.c.l.b16 %v230
      %v270 = vunpack.c.l.b16 %v231
      %v271 = vunpack.c.l.b16 %v232
      %v272 = vunpack.c.l.b16 %v233
      %v273 = vunpack.c.l.b16 %v234
      %v274 = vunpack.c.l.b16 %v235
      %v275 = vunpack.c.l.b16 %v236
      %v276 = vunpack.c.l.b16 %v237
      %v277 = vunpack.c.l.b16 %v238
      %v278 = vunpack.c.l.b16 %v239
      %v279 = vunpack.c.l.b16 %v240
      %v280 = vpack.c.b16 %v265, %v264
      %v281 = vpack.c.b16 %v267, %v266
      %v282 = vpack.c.b16 %v269, %v268
      %v283 = vpack.c.b16 %v271, %v270
      %v284 = vpack.c.b16 %v273, %v272
      %v285 = vpack.c.b16 %v275, %v274
      %v286 = vpack.c.b16 %v277, %v276
      %v287 = vpack.c.b16 %v279, %v278
      %296 = vmatprep.subr.bf16.mxu0 0
      %297 = vmatpush1.bf16.msra.mxu0 %v280
      %298 = vmatprep.subr.bf16.mxu0 0
      %299 = vmatpush1.bf16.msra.mxu0 %v281
      %300 = vmatprep.subr.bf16.mxu0 0
      %301 = vmatpush1.bf16.msra.mxu0 %v282
      %302 = vmatprep.subr.bf16.mxu0 0
      %303 = vmatpush1.bf16.msra.mxu0 %v283
      %304 = vmatprep.subr.bf16.mxu0 0
      %305 = vmatpush1.bf16.msra.mxu0 %v284
      %306 = vmatprep.subr.bf16.mxu0 0
      %307 = vmatpush1.bf16.msra.mxu0 %v285
      %308 = vmatprep.subr.bf16.mxu0 0
      %309 = vmatpush1.bf16.msra.mxu0 %v286
      %310 = vmatprep.subr.bf16.mxu0 0
      %311 = vmatpush1.bf16.msra.mxu0 %v287
      %312 = vmatprep.subr.bf16.mxu0 0
      %313 = vmatpush1.bf16.msra.mxu0 0
      %314 = vmatprep.subr.bf16.mxu0 0
      %315 = vmatpush1.bf16.msra.mxu0 0
      %316 = vmatprep.subr.bf16.mxu0 0
      %317 = vmatpush1.bf16.msra.mxu0 0
      %318 = vmatprep.subr.bf16.mxu0 0
      %319 = vmatpush1.bf16.msra.mxu0 0
      %320 = vmatprep.subr.bf16.mxu0 0
      %321 = vmatpush1.bf16.msra.mxu0 0
      %322 = vmatprep.subr.bf16.mxu0 0
      %323 = vmatpush1.bf16.msra.mxu0 0
      %324 = vmatprep.subr.bf16.mxu0 0
      %325 = vmatpush1.bf16.msra.mxu0 0
      %326 = vmatprep.subr.bf16.mxu0 0
      %327 = vmatpush1.bf16.msra.mxu0 0
      %328 = vmatprep.mubr.bf16.mxu0 0
      %329 = vmatmul.mubr.bf16.gmra.mrb[0].mxu0 %v224
      %v330 = vpop.f32.mrb[0].mxu0
      %v331 = vadd.f32 %v246, %v330
      %v332 = vpop.f32.mrb[0].mxu0
      %v333 = vpop.f32.mrb[0].mxu0
      %v334 = vadd.f32 %v246, %v333
      %v335 = vpop.f32.mrb[0].mxu0
      %336 = vdwg.mxu0
      %v337 = vmax.f32 %v331, 0.0
      %v338 = vmax.f32 %v334, 0.0
      %v339 = vpack.c.bf16 %v338, %v337
      %v340 = vld [vmem:[#allocation9] sm:$0xf]
      %v341 = vld [vmem:[#allocation9 + $0x4] sm:$0xf]
      %v342 = vld [vmem:[#allocation9 + $0x8] sm:$0xf]
      %v343 = vld [vmem:[#allocation9 + $0xc] sm:$0xf]
      %v344 = vld [vmem:[#allocation9 + $0x10] sm:$0xf]
      %v345 = vld [vmem:[#allocation9 + $0x14] sm:$0xf]
      %v346 = vld [vmem:[#allocation9 + $0x18] sm:$0xf]
      %v347 = vld [vmem:[#allocation9 + $0x1c] sm:$0xf]
      %v348 = vld [vmem:[#allocation9 + $0x20] sm:$0xf]
      %v349 = vld [vmem:[#allocation9 + $0x24] sm:$0xf]
      %v350 = vld [vmem:[#allocation9 + $0x28] sm:$0xf]
      %v351 = vld [vmem:[#allocation9 + $0x2c] sm:$0xf]
      %v352 = vld [vmem:[#allocation9 + $0x30] sm:$0xf]
      %v353 = vld [vmem:[#allocation9 + $0x34] sm:$0xf]
      %v354 = vld [vmem:[#allocation9 + $0x38] sm:$0xf]
      %v355 = vld [vmem:[#allocation9 + $0x3c] sm:$0xf]
      %v356 = vld [vmem:[%s6] sm:$0x1]
      %v358 = vlaneseq
      %v359 = vshrl.u32 %v358, 7
      %v360 = vsub.s32 0, %v359
      %v361 = vrot.slane %v356, %v360
      %v379 = vunpack.c.l.b16 %v340
      %v380 = vunpack.c.l.b16 %v341
      %v381 = vunpack.c.l.b16 %v342
      %v382 = vunpack.c.l.b16 %v343
      %v383 = vunpack.c.l.b16 %v344
      %v384 = vunpack.c.l.b16 %v345
      %v385 = vunpack.c.l.b16 %v346
      %v386 = vunpack.c.l.b16 %v347
      %v387 = vunpack.c.l.b16 %v348
      %v388 = vunpack.c.l.b16 %v349
      %v389 = vunpack.c.l.b16 %v350
      %v390 = vunpack.c.l.b16 %v351
      %v391 = vunpack.c.l.b16 %v352
      %v392 = vunpack.c.l.b16 %v353
      %v393 = vunpack.c.l.b16 %v354
      %v394 = vunpack.c.l.b16 %v355
      %v395 = vpack.c.b16 %v380, %v379
      %v396 = vpack.c.b16 %v382, %v381
      %v397 = vpack.c.b16 %v384, %v383
      %v398 = vpack.c.b16 %v386, %v385
      %v399 = vpack.c.b16 %v388, %v387
      %v400 = vpack.c.b16 %v390, %v389
      %v401 = vpack.c.b16 %v392, %v391
      %v402 = vpack.c.b16 %v394, %v393
      %411 = vmatprep.subr.bf16.mxu0 0
      %412 = vmatpush1.bf16.msra.mxu0 %v395
      %413 = vmatprep.subr.bf16.mxu0 0
      %414 = vmatpush1.bf16.msra.mxu0 %v396
      %415 = vmatprep.subr.bf16.mxu0 0
      %416 = vmatpush1.bf16.msra.mxu0 %v397
      %417 = vmatprep.subr.bf16.mxu0 0
      %418 = vmatpush1.bf16.msra.mxu0 %v398
      %419 = vmatprep.subr.bf16.mxu0 0
      %420 = vmatpush1.bf16.msra.mxu0 %v399
      %421 = vmatprep.subr.bf16.mxu0 0
      %422 = vmatpush1.bf16.msra.mxu0 %v400
      %423 = vmatprep.subr.bf16.mxu0 0
      %424 = vmatpush1.bf16.msra.mxu0 %v401
      %425 = vmatprep.subr.bf16.mxu0 0
      %426 = vmatpush1.bf16.msra.mxu0 %v402
      %427 = vmatprep.subr.bf16.mxu0 0
      %428 = vmatpush1.bf16.msra.mxu0 0
      %429 = vmatprep.subr.bf16.mxu0 0
      %430 = vmatpush1.bf16.msra.mxu0 0
      %431 = vmatprep.subr.bf16.mxu0 0
      %432 = vmatpush1.bf16.msra.mxu0 0
      %433 = vmatprep.subr.bf16.mxu0 0
      %434 = vmatpush1.bf16.msra.mxu0 0
      %435 = vmatprep.subr.bf16.mxu0 0
      %436 = vmatpush1.bf16.msra.mxu0 0
      %437 = vmatprep.subr.bf16.mxu0 0
      %438 = vmatpush1.bf16.msra.mxu0 0
      %439 = vmatprep.subr.bf16.mxu0 0
      %440 = vmatpush1.bf16.msra.mxu0 0
      %441 = vmatprep.subr.bf16.mxu0 0
      %442 = vmatpush1.bf16.msra.mxu0 0
      %443 = vmatprep.mubr.bf16.mxu0 0
      %444 = vmatmul.mubr.bf16.gmra.mrb[0].mxu0 %v339
      %v445 = vpop.f32.mrb[0].mxu0
      %v446 = vadd.f32 %v361, %v445
      %v447 = vpop.f32.mrb[0].mxu0
      %v448 = vpop.f32.mrb[0].mxu0
      %v449 = vadd.f32 %v361, %v448
      %v450 = vpop.f32.mrb[0].mxu0
      %451 = vdwg.mxu0
      %452 = vmax.xlane.f32.xlu0 %v446
      %v453 = vpop.xlane.xlu0 %452
      %454 = vmax.xlane.f32.xlu0 %v449
      %v455 = vpop.xlane.xlu0 %454
      %v456 = vsub.f32 %v446, %v453
      %v457 = vsub.f32 %v449, %v455
      %v458 = vmul.f32 %v456, 1.442695
      %v459 = vpow.pop %v458
      %v460 = vmul.f32 %v457, 1.442695
      %v461 = vpow.pop %v460
      %462 = vadd.xlane.f32.xlu0 %v459
      %v463 = vpop.xlane.xlu0 %462
      %464 = vadd.xlane.f32.xlu0 %v461
      %v465 = vpop.xlane.xlu0 %464
      %v466 = vrcp.pop %v463
      %v467 = vmul.f32 %v459, %v466
      %v468 = vrcp.pop %v465
      %v469 = vmul.f32 %v461, %v468
      %470 = vst [vmem:[#allocation11] sm:$0xff] %v467
      %471 = vst [vmem:[#allocation11 + $0x8] sm:$0xff] %v469
    $region53: #{tpu_custom_call.1} parent=1 // pred_fallthru
      _
    // Predicated region
    $region54: #{tpu_custom_call.1} parent=1 // pred_check
      _
    $region55: #{tpu_custom_call.1} parent=1 // pred_check_branch
      %473 = sbr.rel (0) target = $region57
    $region56: #{tpu_custom_call.1} parent=1 // pred_region
      %s475 = ssub.s32 256, 256
      %476 = vsyncadd [#allocation5], %s475
      %s477 = sshll.u32 [#allocation11], 4
      %s478 = int_to_ptr.vmem [resolvable:$true] %s477
      %483 = dma.vmem_to_hbm [thread:$0]  %s478, 256, %s7, [#allocation5], 128, 128, 8
    $region57: #{tpu_custom_call.1} parent=1 // pred_fallthru
      _
    // Predicated region
    $region58: #{tpu_custom_call.1} parent=1 // pred_check
      _
    $region59: #{tpu_custom_call.1} parent=1 // pred_check_branch
      %485 = sbr.rel (0) target = $region61
    $region60: #{tpu_custom_call.1} parent=1 // pred_region
      %486 = dma.done [#allocation5], 256
    $region61: #{tpu_custom_call.1} parent=1 // pred_fallthru
      _
    %487 = vsyncpa [#allocation4], 1
    %488 = vsyncpa [#allocation7], 1
    %489 = vsyncpa [#allocation10], 1
    %490 = vsyncpa [#allocation5], 1

</llo_original>
